<compile_context>
chip_gen: v7x
topology: tpu7x:2x2x1
jax: 0.10.0
libtpu: 0.0.40
codegen_flags: <defaults>
</compile_context>

<pallas_src>
import functools

import jax
import jax.numpy as jnp
from jax import lax
from jax.experimental import pallas as pl
from jax.experimental.pallas import tpu as pltpu

MEM_N, MEM_M = 128, 20        # memory_dims
NUM_HIDDEN = 32               # ctrlr / num_hidden
NUM_SHIFTS = 3
PACKED = MEM_M + 1 + 1 + NUM_SHIFTS + 1   # key | beta | gate | shift | gamma


def _vmem_spec():
    # Whole-array block resident in VMEM, no grid (single kernel invocation).
    return pl.BlockSpec(memory_space=pltpu.MemorySpace.VMEM)


def _softmax_rows(x):
    x = x - jnp.max(x, axis=-1, keepdims=True)
    e = jnp.exp(x)
    return e / jnp.sum(e, axis=-1, keepdims=True)


# --------------------------------------------------------------------------
# Shared addressing math (Head.forward, get_weights=True)
# --------------------------------------------------------------------------
def _addressing(h, w_tm1, m, w_pk, b_pk, *, literal_shift_conv):
    f32 = jnp.float32
    # One fused matmul for all five heads: (B,H) @ (H, M+2+S+1) + bias.
    z = jnp.dot(h, w_pk, preferred_element_type=f32) + b_pk

    M, S = MEM_M, NUM_SHIFTS
    k_t = jnp.clip(z[:, :M], 0.0, 1.0)                              # (B, M)
    beta_t = jnp.maximum(z[:, M:M + 1], 0.0)                        # (B, 1)
    g_t = jnp.clip(z[:, M + 1:M + 2], 0.0, 1.0)                     # (B, 1)
    s_t = _softmax_rows(z[:, M + 2:M + 2 + S])                      # (B, S)
    gamma_t = 1.0 + jnp.maximum(z[:, M + 2 + S:M + 3 + S], 0.0)     # (B, 1)

    # Content addressing: cosine similarity between k_t and each memory row.
    # TODO(synk): cosine_similarity() is undefined in the reference snippet;
    # using the standard NTM form with a 1e-6 epsilon in the denominator.
    dots = lax.dot_general(k_t, m, (((1,), (1,)), ((), ())),
                           preferred_element_type=f32)              # (B, N) MXU
    k_norm = jnp.sqrt(jnp.sum(k_t * k_t, axis=-1, keepdims=True))   # (B, 1)
    # m-row norms via the otherwise-idle MXU, produced directly as a (1, N)
    # row so the denominator is a cheap VPU broadcast multiply.
    ones_row = jnp.ones((1, m.shape[1]), dtype=f32)
    m_sq_row = lax.dot_general(ones_row, m * m, (((1,), (1,)), ((), ())),
                               preferred_element_type=f32)          # (1, N)
    sim = dots / (k_norm * jnp.sqrt(m_sq_row) + 1e-6)               # (B, N)

    w_c = _softmax_rows(sim * beta_t)                               # (B, N)
    w_g = g_t * w_c + (1.0 - g_t) * w_tm1                           # (B, N)

    if literal_shift_conv:
        # Literal reproduction of the reference Funct.conv2d shift: the 1-high
        # kernel only ever sees the zero H-padding row, so the sliced w_tilde
        # is identically zero and the result is the uniform 1/N distribution.
        w_tilde = jnp.zeros_like(w_g)
    else:
        # Intended NTM shift: per-row circular 3-tap convolution of w_g with
        # s_t, using XLU rotations + VPU FMAs.
        # TODO(synk): circular boundary (NTM semantics) instead of the
        # reference's zero-padded conv edges.
        n = w_g.shape[-1]
        w_prev = pltpu.roll(w_g, 1, 1)       # element i <- w_g[i-1]
        w_next = pltpu.roll(w_g, n - 1, 1)   # element i <- w_g[i+1]
        w_tilde = (s_t[:, 0:1] * w_prev
                   + s_t[:, 1:2] * w_g
                   + s_t[:, 2:3] * w_next)

    # Sharpen + renormalize.
    w = jnp.power(w_tilde + 1e-6, gamma_t)
    return w / jnp.sum(w, axis=-1, keepdims=True)


# --------------------------------------------------------------------------
# Kernels
# --------------------------------------------------------------------------
def _read_kernel(w_tm1_ref, m_ref, r_ref):
    # ReadHead.forward(get_weights=False): r_t = w_tm1 @ m_t
    r_ref[...] = jnp.dot(w_tm1_ref[...], m_ref[...],
                         preferred_element_type=jnp.float32).astype(r_ref.dtype)


def _address_kernel(h_ref, w_tm1_ref, m_ref, w_pk_ref, b_pk_ref, w_out_ref, *,
                    literal_shift_conv):
    w = _addressing(h_ref[...], w_tm1_ref[...], m_ref[...],
                    w_pk_ref[...], b_pk_ref[...],
                    literal_shift_conv=literal_shift_conv)
    w_out_ref[...] = w.astype(w_out_ref.dtype)


def _step_kernel(h_ref, w_tm1_ref, m_ref, w_pk_ref, b_pk_ref,
                 r_ref, w_out_ref, *, literal_shift_conv):
    # Fused per-timestep call: read vector and addressing weights together.
    w_tm1 = w_tm1_ref[...]
    m = m_ref[...]
    r_ref[...] = jnp.dot(w_tm1, m,
                         preferred_element_type=jnp.float32).astype(r_ref.dtype)
    w = _addressing(h_ref[...], w_tm1, m, w_pk_ref[...], b_pk_ref[...],
                    literal_shift_conv=literal_shift_conv)
    w_out_ref[...] = w.astype(w_out_ref.dtype)


# --------------------------------------------------------------------------
# Wrappers
# --------------------------------------------------------------------------
def read_head_read(w_tm1, m_t):
    """ReadHead.forward(get_weights=False): r_t = w_tm1 @ m_t."""
    B = w_tm1.shape[0]
    M = m_t.shape[1]
    return pl.pallas_call(
        _read_kernel,
        out_shape=jax.ShapeDtypeStruct((B, M), w_tm1.dtype),
        in_specs=[_vmem_spec(), _vmem_spec()],
        out_specs=_vmem_spec(),
    )(w_tm1, m_t)


def read_head_address(h_t, w_tm1, m_t, w_packed, b_packed, *,
                      literal_shift_conv=False):
    """ReadHead.forward(get_weights=True): full Head addressing -> w (B, N)."""
    h_t = h_t.reshape(h_t.shape[0], -1)   # h_t.view(-1, num_flat_features(h_t))
    B = h_t.shape[0]
    N = m_t.shape[0]
    kernel = functools.partial(_address_kernel,
                               literal_shift_conv=literal_shift_conv)
    return pl.pallas_call(
        kernel,
        out_shape=jax.ShapeDtypeStruct((B, N), jnp.float32),
        in_specs=[_vmem_spec()] * 5,
        out_specs=_vmem_spec(),
    )(h_t, w_tm1, m_t, w_packed, b_packed)


def read_head_step(h_t, w_tm1, m_t, w_packed, b_packed, *,
                   literal_shift_conv=False):
    """Fused per-timestep call: one pallas_call emitting (r_t, w)."""
    h_t = h_t.reshape(h_t.shape[0], -1)
    B = h_t.shape[0]
    N, M = m_t.shape
    kernel = functools.partial(_step_kernel,
                               literal_shift_conv=literal_shift_conv)
    return pl.pallas_call(
        kernel,
        out_shape=(jax.ShapeDtypeStruct((B, M), w_tm1.dtype),
                   jax.ShapeDtypeStruct((B, N), jnp.float32)),
        in_specs=[_vmem_spec()] * 5,
        out_specs=(_vmem_spec(), _vmem_spec()),
    )(h_t, w_tm1, m_t, w_packed, b_packed)


# --------------------------------------------------------------------------
# Parameter init / packing (nn.Linear default-style uniform init)
# --------------------------------------------------------------------------
def init_params(key, num_hidden=NUM_HIDDEN, num_shifts=NUM_SHIFTS,
                memory_dims=(MEM_N, MEM_M)):
    _, M = memory_dims
    ks = jax.random.split(key, 10)

    def lin_init(kw, kb, fan_in, fan_out):
        bound = 1.0 / (fan_in ** 0.5)
        w = jax.random.uniform(kw, (fan_in, fan_out), jnp.float32, -bound, bound)
        b = jax.random.uniform(kb, (1, fan_out), jnp.float32, -bound, bound)
        return w, b

    key_w, key_b = lin_init(ks[0], ks[1], num_hidden, M)
    beta_w, beta_b = lin_init(ks[2], ks[3], num_hidden, 1)
    gate_w, gate_b = lin_init(ks[4], ks[5], num_hidden, 1)
    shift_w, shift_b = lin_init(ks[6], ks[7], num_hidden, num_shifts)
    gamma_w, gamma_b = lin_init(ks[8], ks[9], num_hidden, 1)
    return dict(key_w=key_w, key_b=key_b, beta_w=beta_w, beta_b=beta_b,
                gate_w=gate_w, gate_b=gate_b, shift_w=shift_w, shift_b=shift_b,
                gamma_w=gamma_w, gamma_b=gamma_b)


def pack_params(params):
    """Pack the five heads into one (H, M+2+S+1) weight and (1, ...) bias.

    Done ONCE at setup time (not per forward call) so each pallas_call sees 5
    contiguous inputs instead of 13 padded tiles / DMAs.
    Column layout: [key | beta | gate | shift | gamma].
    """
    w_packed = jnp.concatenate(
        [params["key_w"], params["beta_w"], params["gate_w"],
         params["shift_w"], params["gamma_w"]], axis=1)
    b_packed = jnp.concatenate(
        [params["key_b"], params["beta_b"], params["gate_b"],
         params["shift_b"], params["gamma_b"]], axis=1)
    return w_packed, b_packed


# --------------------------------------------------------------------------
# Pure-JAX reference (for correctness checks)
# --------------------------------------------------------------------------
def _addressing_ref(h_t, w_tm1, m_t, w_packed, b_packed,
                    literal_shift_conv=False):
    hi = lax.Precision.HIGHEST
    z = jnp.dot(h_t, w_packed, precision=hi) + b_packed
    M, S = MEM_M, NUM_SHIFTS
    k_t = jnp.clip(z[:, :M], 0.0, 1.0)
    beta_t = jnp.maximum(z[:, M:M + 1], 0.0)
    g_t = jnp.clip(z[:, M + 1:M + 2], 0.0, 1.0)
    s_t = jax.nn.softmax(z[:, M + 2:M + 2 + S], axis=-1)
    gamma_t = 1.0 + jnp.maximum(z[:, M + 2 + S:M + 3 + S], 0.0)
    k_norm = jnp.sqrt(jnp.sum(k_t * k_t, axis=-1, keepdims=True))
    m_norm = jnp.sqrt(jnp.sum(m_t * m_t, axis=-1, keepdims=True)).T
    sim = jnp.dot(k_t, m_t.T, precision=hi) / (k_norm * m_norm + 1e-6)
    w_c = jax.nn.softmax(sim * beta_t, axis=-1)
    w_g = g_t * w_c + (1.0 - g_t) * w_tm1
    if literal_shift_conv:
        w_tilde = jnp.zeros_like(w_g)
    else:
        w_tilde = (s_t[:, 0:1] * jnp.roll(w_g, 1, axis=1)
                   + s_t[:, 1:2] * w_g
                   + s_t[:, 2:3] * jnp.roll(w_g, -1, axis=1))
    w = jnp.power(w_tilde + 1e-6, gamma_t)
    return w / jnp.sum(w, axis=-1, keepdims=True)


if __name__ == "__main__":
    root = jax.random.PRNGKey(0)
    k1, k2, k3, kp = jax.random.split(root, 4)
    B = 2

    h_t = jax.random.normal(k1, (B, NUM_HIDDEN), jnp.float32)
    w_tm1 = jax.nn.softmax(jax.random.normal(k2, (B, MEM_N), jnp.float32), axis=-1)
    m_t = jax.random.normal(k3, (MEM_N, MEM_M), jnp.float32)

    params = init_params(kp)
    w_packed, b_packed = pack_params(params)
    assert w_packed.shape == (NUM_HIDDEN, PACKED) and b_packed.shape == (1, PACKED)

    # --- get_weights=False: r_t = w_tm1 @ m_t ------------------------------
    r_t = read_head_read(w_tm1, m_t)
    jax.block_until_ready(r_t)
    r_ref = jnp.dot(w_tm1, m_t, precision=lax.Precision.HIGHEST)
    assert r_t.shape == (B, MEM_M)
    assert jnp.allclose(r_t, r_ref, atol=1e-4, rtol=1e-4)

    # --- get_weights=True: full addressing (NTM circular shift) ------------
    w = read_head_address(h_t, w_tm1, m_t, w_packed, b_packed)
    jax.block_until_ready(w)
    w_ref = _addressing_ref(h_t, w_tm1, m_t, w_packed, b_packed)
    assert w.shape == (B, MEM_N)
    assert bool(jnp.all(w >= 0.0))
    assert jnp.allclose(jnp.sum(w, axis=-1), jnp.ones((B,)), atol=1e-4)
    assert jnp.allclose(w, w_ref, atol=1e-5, rtol=1e-3)

    # --- literal reproduction of the reference conv2d (w_tilde == 0) -------
    w_lit = read_head_address(h_t, w_tm1, m_t, w_packed, b_packed,
                              literal_shift_conv=True)
    jax.block_until_ready(w_lit)
    assert jnp.allclose(w_lit, jnp.full((B, MEM_N), 1.0 / MEM_N), atol=1e-5)

    # --- fused per-step kernel: r_t and w from one pallas_call -------------
    r_f, w_f = read_head_step(h_t, w_tm1, m_t, w_packed, b_packed)
    jax.block_until_ready((r_f, w_f))
    assert jnp.allclose(r_f, r_t, atol=1e-5, rtol=1e-5)
    assert jnp.allclose(w_f, w, atol=1e-5, rtol=1e-5)

    print("KERNEL_OK")
</pallas_src>

<mosaic_0001>
module attributes {stable_mosaic.version = 11 : i64} {
  func.func @_read_kernel(%arg0: memref<2x128xf32, #tpu.memory_space<vmem>>, %arg1: memref<128x20xf32, #tpu.memory_space<vmem>>, %arg2: memref<2x20xf32, #tpu.memory_space<vmem>>) attributes {dimension_semantics = [], scalar_prefetch = 0 : i64, scratch_operands = 0 : i64, tpu.core_type = #tpu.core_type<tc>} {
    %c0 = arith.constant 0 : index
    %c0_0 = arith.constant 0 : index
    %0 = vector.load %arg0[%c0, %c0_0] : memref<2x128xf32, #tpu.memory_space<vmem>>, vector<2x128xf32>
    %c0_1 = arith.constant 0 : index
    %c0_2 = arith.constant 0 : index
    %1 = vector.load %arg1[%c0_1, %c0_2] : memref<128x20xf32, #tpu.memory_space<vmem>>, vector<128x20xf32>
    %cst = arith.constant dense<0.000000e+00> : vector<2x20xf32>
    %2 = tpu.matmul %0, %1, %cst {dimension_numbers = #tpu.dot_dimension_numbers<[1], [0], [0], [1], [0, 0, 1, 1], [], []>} : vector<2x128xf32>, vector<128x20xf32>, vector<2x20xf32> -> vector<2x20xf32>
    %c0_3 = arith.constant 0 : index
    %c0_4 = arith.constant 0 : index
    %3 = vector.load %arg2[%c0_3, %c0_4] : memref<2x20xf32, #tpu.memory_space<vmem>>, vector<2x20xf32>
    tpu.vector_store %arg2[%c0_3, %c0_4], %2 {strides = array<i32>} : memref<2x20xf32, #tpu.memory_space<vmem>>, vector<2x20xf32>,
    return
  }
}

</mosaic_0001>

<llo_original>
// kernel: tpu_custom_call.1
$region0: #{tpu_custom_call.1}
  #allocation0 [shape = 'u32[]', space=smem, size = 0x4, offset = 0x4, fixed_abs, tag = 'smem constant byte address 0x4 - core index']
  #allocation1 [shape = 'u32[144,128]{1,0:T(1,128)}', space=vmem, size = 0x12000, scoped, tag = 'internal scratch']
  %s0 = inlined_call_operand.vmem [shape: f32[2,128], index: 0, kind: input, shape index: {}]
  %s1 = inlined_call_operand.vmem [shape: f32[128,20], index: 1, kind: input, shape index: {}]
  %s2 = inlined_call_operand.hbm [shape: f32[2,20], index: 2, kind: output, shape index: {}]
  %s3 = sld [smem:[#allocation0]]
  $region18: #{tpu_custom_call.1} parent=0
    _
  %s5 = ssub.s32 1, %s3
  %s6 = scalar_select 0, %s5, %s3
  $region1: #{tpu_custom_call.1} parent=0
    #allocation2 [shape = 'u8[1024]{0}', space=vmem, size = 0x400, scoped, tag = 'output window, operand 0, single buffered']
    #allocation3 [shape = 's32[1]{0}', space=sflag, size = 0x4, scoped, tag = 'scoped memory for tpu_custom_call.1']
    %7 = vsyncpa [#allocation3], 0
    // Predicated region
    $region2: #{tpu_custom_call.1} parent=1 // pred_check
      _
    $region3: #{tpu_custom_call.1} parent=1 // pred_check_branch
      %9 = sbr.rel (0) target = $region5
    $region4: #{tpu_custom_call.1} parent=1 // pred_region
      _
    $region5: #{tpu_custom_call.1} parent=1 // pred_fallthru
      _
    // Predicated region
    $region6: #{tpu_custom_call.1} parent=1 // pred_check
      _
    $region7: #{tpu_custom_call.1} parent=1 // pred_check_branch
      %11 = sbr.rel (0) target = $region9
    $region8: #{tpu_custom_call.1} parent=1 // pred_region
      _
    $region9: #{tpu_custom_call.1} parent=1 // pred_fallthru
      _
    %v12 = vld [vmem:[%s0] sm:$0x3]
    %v13 = vld [vmem:[%s1] sm:$0xff]
    %v14 = vld [vmem:[%s1 + $0x8] sm:$0xff]
    %v15 = vld [vmem:[%s1 + $0x10] sm:$0xff]
    %v16 = vld [vmem:[%s1 + $0x18] sm:$0xff]
    %v17 = vld [vmem:[%s1 + $0x20] sm:$0xff]
    %v18 = vld [vmem:[%s1 + $0x28] sm:$0xff]
    %v19 = vld [vmem:[%s1 + $0x30] sm:$0xff]
    %v20 = vld [vmem:[%s1 + $0x38] sm:$0xff]
    %v21 = vld [vmem:[%s1 + $0x40] sm:$0xff]
    %v22 = vld [vmem:[%s1 + $0x48] sm:$0xff]
    %v23 = vld [vmem:[%s1 + $0x50] sm:$0xff]
    %v24 = vld [vmem:[%s1 + $0x58] sm:$0xff]
    %v25 = vld [vmem:[%s1 + $0x60] sm:$0xff]
    %v26 = vld [vmem:[%s1 + $0x68] sm:$0xff]
    %v27 = vld [vmem:[%s1 + $0x70] sm:$0xff]
    %v28 = vld [vmem:[%s1 + $0x78] sm:$0xff]
    %29 = vmatprep.subr.mxu0 0.0
    %30 = vmatpush1.msra.mxu0 %v13
    %31 = vmatprep.subr.mxu0 0.0
    %32 = vmatpush1.msra.mxu0 %v14
    %33 = vmatprep.subr.mxu0 0.0
    %34 = vmatpush1.msra.mxu0 %v15
    %35 = vmatprep.subr.mxu0 0.0
    %36 = vmatpush1.msra.mxu0 %v16
    %37 = vmatprep.subr.mxu0 0.0
    %38 = vmatpush1.msra.mxu0 %v17
    %39 = vmatprep.subr.mxu0 0.0
    %40 = vmatpush1.msra.mxu0 %v18
    %41 = vmatprep.subr.mxu0 0.0
    %42 = vmatpush1.msra.mxu0 %v19
    %43 = vmatprep.subr.mxu0 0.0
    %44 = vmatpush1.msra.mxu0 %v20
    %45 = vmatprep.subr.mxu0 0.0
    %46 = vmatpush1.msra.mxu0 %v21
    %47 = vmatprep.subr.mxu0 0.0
    %48 = vmatpush1.msra.mxu0 %v22
    %49 = vmatprep.subr.mxu0 0.0
    %50 = vmatpush1.msra.mxu0 %v23
    %51 = vmatprep.subr.mxu0 0.0
    %52 = vmatpush1.msra.mxu0 %v24
    %53 = vmatprep.subr.mxu0 0.0
    %54 = vmatpush1.msra.mxu0 %v25
    %55 = vmatprep.subr.mxu0 0.0
    %56 = vmatpush1.msra.mxu0 %v26
    %57 = vmatprep.subr.mxu0 0.0
    %58 = vmatpush1.msra.mxu0 %v27
    %59 = vmatprep.subr.mxu0 0.0
    %60 = vmatpush1.msra.mxu0 %v28
    %61 = vmatprep.subr.mxu0 0.0
    %62 = vmatpush1.msra.mxu0 0.0
    %63 = vmatprep.subr.mxu0 0.0
    %64 = vmatpush1.msra.mxu0 0.0
    %65 = vmatprep.subr.mxu0 0.0
    %66 = vmatpush1.msra.mxu0 0.0
    %67 = vmatprep.subr.mxu0 0.0
    %68 = vmatpush1.msra.mxu0 0.0
    %69 = vmatprep.subr.mxu0 0.0
    %70 = vmatpush1.msra.mxu0 0.0
    %71 = vmatprep.subr.mxu0 0.0
    %72 = vmatpush1.msra.mxu0 0.0
    %73 = vmatprep.subr.mxu0 0.0
    %74 = vmatpush1.msra.mxu0 0.0
    %75 = vmatprep.subr.mxu0 0.0
    %76 = vmatpush1.msra.mxu0 0.0
    %77 = vmatprep.subr.mxu0 0.0
    %78 = vmatpush1.msra.mxu0 0.0
    %79 = vmatprep.subr.mxu0 0.0
    %80 = vmatpush1.msra.mxu0 0.0
    %81 = vmatprep.subr.mxu0 0.0
    %82 = vmatpush1.msra.mxu0 0.0
    %83 = vmatprep.subr.mxu0 0.0
    %84 = vmatpush1.msra.mxu0 0.0
    %85 = vmatprep.subr.mxu0 0.0
    %86 = vmatpush1.msra.mxu0 0.0
    %87 = vmatprep.subr.mxu0 0.0
    %88 = vmatpush1.msra.mxu0 0.0
    %89 = vmatprep.subr.mxu0 0.0
    %90 = vmatpush1.msra.mxu0 0.0
    %91 = vmatprep.subr.mxu0 0.0
    %92 = vmatpush1.msra.mxu0 0.0
    %93 = vmatprep.mubr.f32.mxu0 0.0
    %94 = vmatmul.mubr.f32.gmra.mrb[0].mxu0 %v12
    %v95 = vpop.f32.mrb[0].mxu0
    %v96 = vadd.f32 0.0, %v95
    %v97 = vpop.f32.mrb[0].mxu0
    %98 = vdwg.mxu0
    %vm99 = vcmask 156672
    %100 = vst.msk [vmem:[#allocation2] sm:$0x3] %vm99, %v96
    // Predicated region
    $region10: #{tpu_custom_call.1} parent=1 // pred_check
      _
    $region11: #{tpu_custom_call.1} parent=1 // pred_check_branch
      %102 = sbr.rel (0) target = $region13
    $region12: #{tpu_custom_call.1} parent=1 // pred_region
      %s104 = ssub.s32 32, 32
      %105 = vsyncadd [#allocation3], %s104
      %s107 = sshll.u32 [#allocation2], 4
      %s108 = int_to_ptr.vmem [resolvable:$true] %s107
      %110 = dma.vmem_to_hbm [thread:$0]  %s108, 32, %s2, [#allocation3]
    $region13: #{tpu_custom_call.1} parent=1 // pred_fallthru
      _
    // Predicated region
    $region14: #{tpu_custom_call.1} parent=1 // pred_check
      _
    $region15: #{tpu_custom_call.1} parent=1 // pred_check_branch
      %112 = sbr.rel (0) target = $region17
    $region16: #{tpu_custom_call.1} parent=1 // pred_region
      %113 = dma.done [#allocation3], 32
    $region17: #{tpu_custom_call.1} parent=1 // pred_fallthru
      _
    %114 = vsyncpa [#allocation3], 1

</llo_original>
